<compile_context>
chip_gen: v6e
topology: v6e:2x2x1
jax: 0.10.0
libtpu: 0.0.40
codegen_flags: <defaults>
</compile_context>

<pallas_src>
import functools

import jax
import jax.numpy as jnp
from jax import lax
from jax.experimental import pallas as pl
from jax.experimental.pallas import tpu as pltpu


# ------------------------------ tiling helpers ------------------------------

def _round_up(x, m):
    return (x + m - 1) // m * m


def _pick_tile(dim, target, granule):
    """Largest multiple of `granule` <= min(target, dim) that divides dim."""
    t = (min(target, dim) // granule) * granule
    while t >= granule:
        if dim % t == 0:
            return t
        t -= granule
    return None


def _tile_or_full(dim, target, granule):
    """Return (tile, padded_dim). Prefers divisor tiles so no padding copies."""
    if dim <= target:
        return dim, dim              # single full-extent block (layout-legal)
    t = _pick_tile(dim, target, granule)
    if t is not None:
        return t, dim
    t = _round_up(target, granule)
    return t, _round_up(dim, t)


@functools.lru_cache(maxsize=None)
def _vmem_limit_bytes():
    """Generation-aware scoped-VMEM budget (v5e/v6e: 128 MiB phys, v7x: 64 MiB)."""
    cap = None
    try:
        cap = getattr(pltpu.get_tpu_info(), "vmem_capacity_bytes", None)
    except Exception:
        cap = None
    if not cap:
        return 32 * 1024 * 1024
    # v7x (64 MiB physical) -> 40 MiB; v5e/v6e (128 MiB) -> 64 MiB.
    return int(min(cap * 5 // 8, 64 * 1024 * 1024))


# ---------------------------------------------------------------------------
# Kernel 1: dense projection with fused bias + tanh epilogue.
#   tanh(x @ w + b); bf16 operands, f32 MXU accumulation, f32 epilogue math.
# ---------------------------------------------------------------------------
def _dense_tanh_resident_kernel(x_ref, w_ref, b_ref, o_ref):
    # Single matmul per M tile; W / bias blocks are constant across the grid so
    # Pallas fetches them once and they stay VMEM-resident.
    acc = jnp.dot(x_ref[...], w_ref[...], preferred_element_type=jnp.float32)
    y = acc + b_ref[...].astype(jnp.float32)      # f32 epilogue (v5e has no bf16 VPU)
    o_ref[...] = jnp.tanh(y).astype(o_ref.dtype)


def _dense_tanh_resident(x, w, b, *, tm_target=512):
    M, K = x.shape
    _, N = w.shape
    out_dtype = x.dtype
    tm, Mp = _tile_or_full(M, tm_target, 8)
    xp = x if Mp == M else jnp.pad(x, ((0, Mp - M), (0, 0)))
    b2 = b.reshape(1, N)
    out = pl.pallas_call(
        _dense_tanh_resident_kernel,
        out_shape=jax.ShapeDtypeStruct((Mp, N), out_dtype),
        grid_spec=pltpu.PrefetchScalarGridSpec(
            num_scalar_prefetch=0,
            grid=(Mp // tm,),
            in_specs=[
                pl.BlockSpec((tm, K), lambda i: (i, 0)),
                pl.BlockSpec((K, N), lambda i: (0, 0)),   # constant block: DMA'd once
                pl.BlockSpec((1, N), lambda i: (0, 0)),
            ],
            out_specs=pl.BlockSpec((tm, N), lambda i: (i, 0)),
        ),
        compiler_params=pltpu.CompilerParams(
            dimension_semantics=("parallel",),            # megacore-shard M on v7x
            vmem_limit_bytes=_vmem_limit_bytes(),
        ),
        # TODO(synk): consider allow_input_fusion so the embedding-sum producer
        # streams straight into the kernel instead of materializing in HBM.
    )(xp, w, b2)
    return out if Mp == M else out[:M]


def _dense_tanh_stream_kernel(x_ref, w_ref, b_ref, o_ref, acc_ref):
    k = pl.program_id(2)

    @pl.when(k == 0)
    def _init():
        acc_ref[...] = jnp.zeros_like(acc_ref)

    acc_ref[...] += jnp.dot(x_ref[...], w_ref[...],
                            preferred_element_type=jnp.float32)

    @pl.when(k == pl.num_programs(2) - 1)
    def _finalize():
        y = acc_ref[...] + b_ref[...].astype(jnp.float32)
        o_ref[...] = jnp.tanh(y).astype(o_ref.dtype)


def _dense_tanh_streaming(x, w, b, *, tm_t=256, tn_t=512, tk_t=512):
    """K-streaming fallback for weights too large to keep VMEM-resident."""
    M, K = x.shape
    _, N = w.shape
    out_dtype = x.dtype
    # Divisor-based tile selection so DPR-style dims are never padded.
    tm, Mp = _tile_or_full(M, tm_t, 8)
    tn, Np = _tile_or_full(N, tn_t, 128)
    tk, Kp = _tile_or_full(K, tk_t, 128)
    xp = x if (Mp, Kp) == (M, K) else jnp.pad(x, ((0, Mp - M), (0, Kp - K)))
    wp = w if (Kp, Np) == (K, N) else jnp.pad(w, ((0, Kp - K), (0, Np - N)))
    bp = (b if Np == N else jnp.pad(b, (0, Np - N))).reshape(1, Np)
    out = pl.pallas_call(
        _dense_tanh_stream_kernel,
        out_shape=jax.ShapeDtypeStruct((Mp, Np), out_dtype),
        grid_spec=pltpu.PrefetchScalarGridSpec(
            num_scalar_prefetch=0,
            grid=(Mp // tm, Np // tn, Kp // tk),
            in_specs=[
                pl.BlockSpec((tm, tk), lambda i, j, k: (i, k),
                             pipeline_mode=pl.Buffered(3)),
                pl.BlockSpec((tk, tn), lambda i, j, k: (k, j),
                             pipeline_mode=pl.Buffered(3)),
                pl.BlockSpec((1, tn), lambda i, j, k: (0, j)),
            ],
            out_specs=pl.BlockSpec((tm, tn), lambda i, j, k: (i, j)),
            scratch_shapes=[pltpu.VMEM((tm, tn), jnp.float32)],
        ),
        compiler_params=pltpu.CompilerParams(
            dimension_semantics=("parallel", "parallel", "arbitrary"),
            vmem_limit_bytes=_vmem_limit_bytes(),
        ),
    )(xp, wp, bp)
    return out if (Mp, Np) == (M, N) else out[:M, :N]


def pallas_dense_tanh(x, w, b):
    """tanh(x @ w + b). Weights-resident single-pass kernel whenever W fits
    comfortably in VMEM (always true for DPR hidden sizes <= 1024)."""
    K, N = w.shape
    w_bytes = K * N * jnp.dtype(w.dtype).itemsize
    if w_bytes <= _vmem_limit_bytes() // 8:
        return _dense_tanh_resident(x, w, b)
    return _dense_tanh_streaming(x, w, b)


# ---------------------------------------------------------------------------
# Kernel 2: masked mean pooling (batch x sequence grid, f32 accumulators).
# ---------------------------------------------------------------------------
def _mean_pool_kernel(emb_ref, mask_ref, o_ref, sum_ref, cnt_ref):
    s = pl.program_id(1)

    @pl.when(s == 0)
    def _init():
        sum_ref[...] = jnp.zeros_like(sum_ref)
        cnt_ref[...] = jnp.zeros_like(cnt_ref)

    emb = emb_ref[...].astype(jnp.float32)           # per-chunk cast only (small)
    mask = mask_ref[...]                             # (tb, ts, 1) f32
    sum_ref[...] += jnp.sum(emb * mask, axis=1)      # (tb, H)
    cnt_ref[...] += jnp.sum(mask, axis=1)            # (tb, 1)

    @pl.when(s == pl.num_programs(1) - 1)
    def _finalize():
        # clamp(min=1e-9) then EUP reciprocal (free slot next to the VPU mul).
        inv = pl.reciprocal(jnp.maximum(cnt_ref[...], 1e-9), approx=True)
        o_ref[...] = (sum_ref[...] * inv).astype(o_ref.dtype)


def pallas_mean_pooling(token_embeddings, attention_mask):
    """Masked mean over the sequence axis (matches torch mean_pooling)."""
    B, S, H = token_embeddings.shape
    out_dtype = token_embeddings.dtype
    mask = attention_mask.astype(jnp.float32).reshape(B, S, 1)

    # Sequence chunking: never hold a full (tb, S, H) block live in-kernel.
    ts, Sp = _tile_or_full(S, 128, 8)
    # Batch tile sized by bytes (emb block is double-buffered and dominates).
    itemsize = jnp.dtype(token_embeddings.dtype).itemsize
    block_budget = max(_vmem_limit_bytes() // 8, 1 << 20)
    tb_max = max(1, block_budget // max(1, ts * H * itemsize))
    tb, Bp = _tile_or_full(B, tb_max, 8)

    if (Bp, Sp) != (B, S):
        token_embeddings = jnp.pad(
            token_embeddings, ((0, Bp - B), (0, Sp - S), (0, 0)))
        mask = jnp.pad(mask, ((0, Bp - B), (0, Sp - S), (0, 0)))

    out = pl.pallas_call(
        _mean_pool_kernel,
        out_shape=jax.ShapeDtypeStruct((Bp, H), out_dtype),
        grid_spec=pltpu.PrefetchScalarGridSpec(
            num_scalar_prefetch=0,
            grid=(Bp // tb, Sp // ts),
            in_specs=[
                pl.BlockSpec((tb, ts, H), lambda i, s: (i, s, 0)),
                pl.BlockSpec((tb, ts, 1), lambda i, s: (i, s, 0)),
            ],
            out_specs=pl.BlockSpec((tb, H), lambda i, s: (i, 0)),
            scratch_shapes=[pltpu.VMEM((tb, H), jnp.float32),
                            pltpu.VMEM((tb, 1), jnp.float32)],
        ),
        compiler_params=pltpu.CompilerParams(
            dimension_semantics=("parallel", "arbitrary"),
            vmem_limit_bytes=_vmem_limit_bytes(),
        ),
    )(token_embeddings, mask)
    return out if Bp == B else out[:B]


# ---------------------------------------------------------------------------
# Kernel 3: fused q2c + c2q score matmuls, tiled over the context axis.
# ---------------------------------------------------------------------------
_DN_LAST = (((1,), (1,)), ((), ()))   # contract last axis of both operands


def _scores_fused_kernel(q_ref, ctx_ref, ctx_pos_ref, q2c_ref, c2q_ref):
    q = q_ref[...]
    q2c_ref[...] = lax.dot_general(q, ctx_ref[...], _DN_LAST,
                                   preferred_element_type=jnp.float32)

    @pl.when(pl.program_id(0) == 0)
    def _():
        c2q_ref[...] = lax.dot_general(ctx_pos_ref[...], q, _DN_LAST,
                                       preferred_element_type=jnp.float32)


def _q2c_kernel(q_ref, ctx_ref, q2c_ref):
    q2c_ref[...] = lax.dot_general(q_ref[...], ctx_ref[...], _DN_LAST,
                                   preferred_element_type=jnp.float32)


def _ctx_tiling(BC, H, itemsize):
    budget = max(_vmem_limit_bytes() // 8, 1 << 20)
    if BC * H * itemsize <= budget:
        return BC, BC                      # whole ctx pool fits in one block
    target = max(128, (budget // (H * itemsize)) // 128 * 128)
    return _tile_or_full(BC, target, 128)  # lane-dense (multiple-of-128) tiles


def pallas_scores(q_pooled, ctx_pooled, ctx_pos=None):
    B, H = q_pooled.shape
    BC = ctx_pooled.shape[0]
    itemsize = jnp.dtype(ctx_pooled.dtype).itemsize
    tbc, BCp = _ctx_tiling(BC, H, itemsize)
    ctx_p = ctx_pooled if BCp == BC else jnp.pad(ctx_pooled,
                                                 ((0, BCp - BC), (0, 0)))
    grid = (BCp // tbc,)

    if ctx_pos is None:
        q2c = pl.pallas_call(
            _q2c_kernel,
            out_shape=jax.ShapeDtypeStruct((B, BCp), jnp.float32),
            grid_spec=pltpu.PrefetchScalarGridSpec(
                num_scalar_prefetch=0,
                grid=grid,
                in_specs=[pl.BlockSpec((B, H), lambda j: (0, 0)),
                          pl.BlockSpec((tbc, H), lambda j: (j, 0))],
                out_specs=pl.BlockSpec((B, tbc), lambda j: (0, j)),
            ),
            compiler_params=pltpu.CompilerParams(
                dimension_semantics=("parallel",),
                vmem_limit_bytes=_vmem_limit_bytes(),
            ),
        )(q_pooled, ctx_p)
        return (q2c if BCp == BC else q2c[:, :BC]), None

    q2c, c2q = pl.pallas_call(
        _scores_fused_kernel,
        out_shape=(jax.ShapeDtypeStruct((B, BCp), jnp.float32),
                   jax.ShapeDtypeStruct((B, B), jnp.float32)),
        grid_spec=pltpu.PrefetchScalarGridSpec(
            num_scalar_prefetch=0,
            grid=grid,
            in_specs=[pl.BlockSpec((B, H), lambda j: (0, 0)),
                      pl.BlockSpec((tbc, H), lambda j: (j, 0)),
                      pl.BlockSpec((B, H), lambda j: (0, 0))],
            out_specs=(pl.BlockSpec((B, tbc), lambda j: (0, j)),
                       pl.BlockSpec((B, B), lambda j: (0, 0))),
        ),
        compiler_params=pltpu.CompilerParams(
            # c2q output block is grid-resident (written at j==0 only), so the
            # BC axis stays sequential; the matmul is tiny so this is cheap.
            dimension_semantics=("arbitrary",),
            vmem_limit_bytes=_vmem_limit_bytes(),
        ),
    )(q_pooled, ctx_p, ctx_pos)
    return (q2c if BCp == BC else q2c[:, :BC]), c2q


# -------------------------- synthetic encoder ------------------------------

def init_encoder_params(key, vocab_size, type_vocab_size, msl, hidden,
                        dtype=jnp.bfloat16):
    k1, k2, k3, k4, k5 = jax.random.split(key, 5)
    scale = 0.02
    # Cast once at init; keep weights/activations in bf16 (MXU-native),
    # accumulation stays f32 inside the kernels.
    return {
        "word_emb": (scale * jax.random.normal(k1, (vocab_size, hidden))).astype(dtype),
        "pos_emb":  (scale * jax.random.normal(k2, (msl, hidden))).astype(dtype),
        "type_emb": (scale * jax.random.normal(k3, (type_vocab_size, hidden))).astype(dtype),
        "proj_w":   (scale * jax.random.normal(k4, (hidden, hidden))).astype(dtype),
        "proj_b":   (scale * jax.random.normal(k5, (hidden,))).astype(dtype),
    }


def encoder_forward(params, input_ids, attention_mask, segment_ids):
    """Minimal encoder: (word + position + segment) embeddings -> dense(tanh).

    Returns (token_embeddings (B, S, H), pooled (B, H)). The pooled output is
    the CLS token; it is only used when pooler_type is not 'mean'.
    """
    B, S = input_ids.shape
    H = params["word_emb"].shape[1]
    # Embedding gathers stay in XLA (no clean Pallas gather at this granularity).
    x = (params["word_emb"][input_ids]
         + params["pos_emb"][None, :S, :]
         + params["type_emb"][segment_ids])                       # (B, S, H) bf16
    # MXU matmul with fused bias + tanh epilogue (activation never bounces via
    # HBM between matmul / bias / tanh); weights stay VMEM-resident.
    y2d = pallas_dense_tanh(x.reshape(B * S, H), params["proj_w"], params["proj_b"])
    y = y2d.reshape(B, S, H)
    pooled = y[:, 0]
    return y, pooled


# ------------------------------ DPR forward --------------------------------

def dpr_forward(q_params, ctx_params,
                questions_input_ids, questions_attention_mask,
                questions_token_type_ids,
                ctx_input_ids, ctx_attention_mask, ctx_token_type_ids,
                pooler_type="mean", mutual_information=True):
    batch_size = questions_input_ids.shape[0]
    num_context = ctx_input_ids.shape[1]
    msl = ctx_input_ids.shape[-1]

    # flatten_ctx_input: (B, num_context, MSL) -> (B*num_context, MSL)
    ctx_input_ids_f = ctx_input_ids.reshape(-1, msl)
    ctx_attention_mask_f = ctx_attention_mask.reshape(-1, msl)
    ctx_token_type_ids_f = ctx_token_type_ids.reshape(-1, msl)

    q_embds, q_embds_pooled = encoder_forward(
        q_params, questions_input_ids, questions_attention_mask,
        questions_token_type_ids)
    ctx_embds, ctx_embds_pooled = encoder_forward(
        ctx_params, ctx_input_ids_f, ctx_attention_mask_f,
        ctx_token_type_ids_f)

    assert pooler_type in ("mean", "cls", "ffn_pooler")
    if pooler_type == "mean":
        q_embds_pooled = pallas_mean_pooling(q_embds, questions_attention_mask)
        ctx_embds_pooled = pallas_mean_pooling(ctx_embds, ctx_attention_mask_f)
    elif pooler_type == "cls":
        q_embds_pooled = q_embds[:, 0]
        ctx_embds_pooled = ctx_embds[:, 0]
    else:
        pass  # ffn_pooler: use encoder-provided pooled embeddings

    hidden = ctx_embds_pooled.shape[-1]
    if mutual_information:
        # Positive contexts (index 0 per question) — cheap XLA strided slice.
        ctx_embeds_for_c2q = ctx_embds_pooled.reshape(
            batch_size, num_context, hidden)[:, 0, :]
        # Single fused kernel computes both score matrices (shared operands).
        q2c_scores, c2q_scores = pallas_scores(
            q_embds_pooled, ctx_embds_pooled, ctx_embeds_for_c2q)
    else:
        q2c_scores, c2q_scores = pallas_scores(q_embds_pooled, ctx_embds_pooled)

    return q2c_scores, c2q_scores, q_embds_pooled, ctx_embds_pooled


# --------------------------------- main -------------------------------------

if __name__ == "__main__":
    batch_size = 2
    num_context = 3
    msl = 8
    hidden = 32
    vocab_size = 64
    type_vocab_size = 2

    key = jax.random.PRNGKey(0)
    k_q, k_c, k_qi, k_ci, k_qm, k_cm = jax.random.split(key, 6)

    q_params = init_encoder_params(k_q, vocab_size, type_vocab_size, msl, hidden)
    ctx_params = init_encoder_params(k_c, vocab_size, type_vocab_size, msl, hidden)

    questions_input_ids = jax.random.randint(k_qi, (batch_size, msl), 0, vocab_size)
    ctx_input_ids = jax.random.randint(k_ci, (batch_size, num_context, msl), 0, vocab_size)

    # attention masks: leading ones with random valid lengths (>= 1)
    q_lens = jax.random.randint(k_qm, (batch_size, 1), 1, msl + 1)
    questions_attention_mask = (jnp.arange(msl)[None, :] < q_lens).astype(jnp.int32)
    c_lens = jax.random.randint(k_cm, (batch_size, num_context, 1), 1, msl + 1)
    ctx_attention_mask = (jnp.arange(msl)[None, None, :] < c_lens).astype(jnp.int32)

    questions_token_type_ids = jnp.zeros((batch_size, msl), jnp.int32)
    ctx_token_type_ids = jnp.zeros((batch_size, num_context, msl), jnp.int32)

    q2c_scores, c2q_scores, q_pooled, ctx_pooled = dpr_forward(
        q_params, ctx_params,
        questions_input_ids, questions_attention_mask, questions_token_type_ids,
        ctx_input_ids, ctx_attention_mask, ctx_token_type_ids,
        pooler_type="mean", mutual_information=True)

    jax.block_until_ready((q2c_scores, c2q_scores, q_pooled, ctx_pooled))

    assert q2c_scores.shape == (batch_size, batch_size * num_context)
    assert c2q_scores.shape == (batch_size, batch_size)
    assert q_pooled.shape == (batch_size, hidden)
    assert ctx_pooled.shape == (batch_size * num_context, hidden)

    print("KERNEL_OK")
</pallas_src>

<mosaic_0001>
module attributes {stable_mosaic.version = 11 : i64} {
  func.func @_dense_tanh_resident_kernel(%arg0: i32, %arg1: memref<16x32xbf16, #tpu.memory_space<vmem>>, %arg2: memref<32x32xbf16, #tpu.memory_space<vmem>>, %arg3: memref<1x32xbf16, #tpu.memory_space<vmem>>, %arg4: memref<16x32xbf16, #tpu.memory_space<vmem>>) attributes {dimension_semantics = [#tpu.dimension_semantics<parallel>], iteration_bounds = array<i64: 1>, scalar_prefetch = 0 : i64, scratch_operands = 0 : i64, tpu.core_type = #tpu.core_type<tc>, window_params = [{transform_indices = @transform_0, window_bounds = array<i64: 16, 32>}, {pipeline_mode = #tpu.pipeline_mode<synchronous>, transform_indices = @transform_1, window_bounds = array<i64: 32, 32>}, {pipeline_mode = #tpu.pipeline_mode<synchronous>, transform_indices = @transform_2, window_bounds = array<i64: 1, 32>}, {transform_indices = @transform_3, window_bounds = array<i64: 16, 32>}]} {
    %c0 = arith.constant 0 : index
    %c0_0 = arith.constant 0 : index
    %0 = vector.load %arg1[%c0, %c0_0] : memref<16x32xbf16, #tpu.memory_space<vmem>>, vector<16x32xbf16>
    %c0_1 = arith.constant 0 : index
    %c0_2 = arith.constant 0 : index
    %1 = vector.load %arg2[%c0_1, %c0_2] : memref<32x32xbf16, #tpu.memory_space<vmem>>, vector<32x32xbf16>
    %cst = arith.constant dense<0.000000e+00> : vector<16x32xf32>
    %2 = tpu.matmul %0, %1, %cst {dimension_numbers = #tpu.dot_dimension_numbers<[1], [0], [0], [1], [0, 0, 1, 1], [], []>} : vector<16x32xbf16>, vector<32x32xbf16>, vector<16x32xf32> -> vector<16x32xf32>
    %c0_3 = arith.constant 0 : index
    %c0_4 = arith.constant 0 : index
    %3 = vector.load %arg3[%c0_3, %c0_4] : memref<1x32xbf16, #tpu.memory_space<vmem>>, vector<1x32xbf16>
    %4 = arith.extf %3 : vector<1x32xbf16> to vector<1x32xf32>
    %5 = vector.broadcast %4 : vector<1x32xf32> to vector<16x32xf32>
    %6 = arith.addf %2, %5 : vector<16x32xf32>
    %7 = math.tanh %6 : vector<16x32xf32>
    %8 = arith.truncf %7 : vector<16x32xf32> to vector<16x32xbf16>
    %c0_5 = arith.constant 0 : index
    %c0_6 = arith.constant 0 : index
    %9 = vector.load %arg4[%c0_5, %c0_6] : memref<16x32xbf16, #tpu.memory_space<vmem>>, vector<16x32xbf16>
    tpu.vector_store %arg4[%c0_5, %c0_6], %8 {strides = array<i32>} : memref<16x32xbf16, #tpu.memory_space<vmem>>, vector<16x32xbf16>,
    return
  }
  func.func @transform_0(%arg0: i32) -> (i32, i32) {
    %c0_i32 = arith.constant 0 : i32
    %c0_i32_0 = arith.constant 0 : i32
    return %arg0, %c0_i32 : i32, i32
  }
  func.func @transform_1(%arg0: i32) -> (i32, i32) {
    %c0_i32 = arith.constant 0 : i32
    %c0_i32_0 = arith.constant 0 : i32
    %c0_i32_1 = arith.constant 0 : i32
    return %c0_i32, %c0_i32_0 : i32, i32
  }
  func.func @transform_2(%arg0: i32) -> (i32, i32) {
    %c0_i32 = arith.constant 0 : i32
    %c0_i32_0 = arith.constant 0 : i32
    %c0_i32_1 = arith.constant 0 : i32
    return %c0_i32, %c0_i32_0 : i32, i32
  }
  func.func @transform_3(%arg0: i32) -> (i32, i32) {
    %c0_i32 = arith.constant 0 : i32
    %c0_i32_0 = arith.constant 0 : i32
    return %arg0, %c0_i32 : i32, i32
  }
}

</mosaic_0001>

<llo_original>
// kernel: tpu_custom_call.1
$region0: #{tpu_custom_call.1}
  #allocation0 [shape = 'u32[]', space=smem, size = 0x4, offset = 0x4, fixed_abs, tag = 'smem constant byte address 0x4 - core index']
  #allocation1 [shape = 'u32[144,128]{1,0:T(1,128)}', space=vmem, size = 0x12000, scoped, tag = 'internal scratch']
  %s0 = inlined_call_operand.hbm [shape: bf16[16,32], index: 0, kind: input, shape index: {}]
  %s1 = inlined_call_operand.hbm [shape: bf16[32,32], index: 1, kind: input, shape index: {}]
  %s2 = inlined_call_operand.vmem [shape: bf16[1,32], index: 2, kind: input, shape index: {}]
  %s3 = inlined_call_operand.hbm [shape: bf16[16,32], index: 3, kind: output, shape index: {}]
  %s4 = sld [smem:[#allocation0]]
  $region30: #{tpu_custom_call.1} parent=0
    _
  %s6 = ssub.s32 1, %s4
  %s7 = scalar_select 0, %s6, %s4
  $region1: #{tpu_custom_call.1} parent=0
    #allocation2 [shape = 'u8[4096]{0}', space=vmem, size = 0x1000, scoped, tag = 'input window, operand 0, single buffered']
    #allocation3 [shape = 's32[1]{0}', space=sflag, size = 0x4, scoped, tag = 'scoped memory for tpu_custom_call.1']
    #allocation4 [shape = 's32[1]{0}', space=sflag, size = 0x4, scoped, tag = 'scoped memory for tpu_custom_call.1']
    #allocation5 [shape = 'u8[8192]{0}', space=vmem, size = 0x2000, scoped, tag = 'input window, operand 1, single buffered']
    #allocation6 [shape = 's32[1]{0}', space=sflag, size = 0x4, scoped, tag = 'scoped memory for tpu_custom_call.1']
    #allocation7 [shape = 'u8[4096]{0}', space=vmem, size = 0x1000, scoped, tag = 'output window, operand 0, single buffered']
    %8 = vsyncpa [#allocation3], 0
    %9 = vsyncpa [#allocation6], 0
    %10 = vsyncpa [#allocation4], 0
    // Predicated region
    $region2: #{tpu_custom_call.1} parent=1 // pred_check
      _
    $region3: #{tpu_custom_call.1} parent=1 // pred_check_branch
      %12 = sbr.rel (0) target = $region5
    $region4: #{tpu_custom_call.1} parent=1 // pred_region
      %s14 = ssub.s32 128, 128
      %15 = vsyncadd [#allocation3], %s14
      %s16 = sshll.u32 [#allocation2], 4
      %s17 = int_to_ptr.vmem [resolvable:$true] %s16
      %22 = dma.hbm_to_vmem [thread:$0]  %s0, 128, %s17, [#allocation3], 64, 64, 4
    $region5: #{tpu_custom_call.1} parent=1 // pred_fallthru
      _
    // Predicated region
    $region6: #{tpu_custom_call.1} parent=1 // pred_check
      _
    $region7: #{tpu_custom_call.1} parent=1 // pred_check_branch
      %24 = sbr.rel (0) target = $region9
    $region8: #{tpu_custom_call.1} parent=1 // pred_region
      %s26 = ssub.s32 256, 256
      %27 = vsyncadd [#allocation6], %s26
      %s28 = sshll.u32 [#allocation5], 4
      %s29 = int_to_ptr.vmem [resolvable:$true] %s28
      %34 = dma.hbm_to_vmem [thread:$0]  %s1, 256, %s29, [#allocation6], 64, 64, 4
    $region9: #{tpu_custom_call.1} parent=1 // pred_fallthru
      _
    // Predicated region
    $region10: #{tpu_custom_call.1} parent=1 // pred_check
      _
    $region11: #{tpu_custom_call.1} parent=1 // pred_check_branch
      %36 = sbr.rel (0) target = $region13
    $region12: #{tpu_custom_call.1} parent=1 // pred_region
      _
    $region13: #{tpu_custom_call.1} parent=1 // pred_fallthru
      _
    // Predicated region
    $region14: #{tpu_custom_call.1} parent=1 // pred_check
      _
    $region15: #{tpu_custom_call.1} parent=1 // pred_check_branch
      %38 = sbr.rel (0) target = $region17
    $region16: #{tpu_custom_call.1} parent=1 // pred_region
      %39 = dma.done [#allocation3], 128
    $region17: #{tpu_custom_call.1} parent=1 // pred_fallthru
      _
    // Predicated region
    $region18: #{tpu_custom_call.1} parent=1 // pred_check
      _
    $region19: #{tpu_custom_call.1} parent=1 // pred_check_branch
      %41 = sbr.rel (0) target = $region21
    $region20: #{tpu_custom_call.1} parent=1 // pred_region
      %42 = dma.done [#allocation6], 256
    $region21: #{tpu_custom_call.1} parent=1 // pred_fallthru
      _
    %v44 = vld [vmem:[#allocation2] sm:$0xf]
    %v45 = vld [vmem:[#allocation2 + $0x4] sm:$0xf]
    %v46 = vld [vmem:[#allocation5] sm:$0xf]
    %v47 = vld [vmem:[#allocation5 + $0x4] sm:$0xf]
    %v48 = vld [vmem:[#allocation5 + $0x8] sm:$0xf]
    %v49 = vld [vmem:[#allocation5 + $0xc] sm:$0xf]
    %v50 = vld [vmem:[%s2] sm:$0x1]
    %v51 = vunpack.c.l.bf16 %v50
    %v52 = vlaneseq
    %v53 = vshrl.u32 %v52, 7
    %v54 = vsub.s32 0, %v53
    %v55 = vrot.slane %v51, %v54
    %v58 = vunpack.c.l.b16 %v44
    %v59 = vunpack.c.l.b16 %v45
    %v60 = vpack.c.b16 %v59, %v58
    %v65 = vunpack.c.l.b16 %v46
    %v66 = vunpack.c.l.b16 %v47
    %v67 = vunpack.c.l.b16 %v48
    %v68 = vunpack.c.l.b16 %v49
    %v69 = vpack.c.b16 %v66, %v65
    %v70 = vpack.c.b16 %v68, %v67
    %vm73 = vcmask 261120
    %v75 = vsel %vm73, %v60, 0
    %77 = vmatprep.subr.bf16.mxu0 0
    %78 = vmatpush1.bf16.msra.mxu0 0
    %79 = vmatprep.subr.bf16.mxu0 0
    %80 = vmatpush1.bf16.msra.mxu0 0
    %81 = vmatprep.subr.bf16.mxu0 0
    %82 = vmatpush1.bf16.msra.mxu0 0
    %83 = vmatprep.subr.bf16.mxu0 0
    %84 = vmatpush1.bf16.msra.mxu0 0
    %85 = vmatprep.subr.bf16.mxu0 0
    %86 = vmatpush1.bf16.msra.mxu0 0
    %87 = vmatprep.subr.bf16.mxu0 0
    %88 = vmatpush1.bf16.msra.mxu0 0
    %89 = vmatprep.subr.bf16.mxu0 0
    %90 = vmatpush1.bf16.msra.mxu0 %v70
    %91 = vmatprep.subr.bf16.mxu0 0
    %92 = vmatpush1.bf16.msra.mxu0 %v69
    %93 = vmatprep.subr.bf16.mxu0 0
    %94 = vmatpush2.bf16.msra.mxu0 0
    %95 = vmatprep.subr.bf16.mxu0 0
    %96 = vmatpush2.bf16.msra.mxu0 0
    %97 = vmatprep.subr.bf16.mxu0 0
    %98 = vmatpush2.bf16.msra.mxu0 0
    %99 = vmatprep.subr.bf16.mxu0 0
    %100 = vmatpush2.bf16.msra.mxu0 0
    %101 = vmatprep.subr.bf16.mxu0 0
    %102 = vmatpush2.bf16.msra.mxu0 0
    %103 = vmatprep.subr.bf16.mxu0 0
    %104 = vmatpush2.bf16.msra.mxu0 0
    %105 = vmatprep.subr.bf16.mxu0 0
    %106 = vmatpush2.bf16.msra.mxu0 0
    %107 = vmatprep.subr.bf16.mxu0 0
    %108 = vmatpush2.bf16.msra.mxu0 0
    %109 = vmatprep.mubr.bf16.mxu0 0
    %110 = vmatmul.mubr.bf16.gmra.mxu0 %v75
    %v111 = vpop.f32.mrf.mxu0
    %v112 = vadd.f32 %v55, %v111
    %v113 = vpop.f32.mrf.mxu0
    %v114 = vpop.f32.mrf.mxu0
    %v115 = vadd.f32 %v55, %v114
    %v116 = vpop.f32.mrf.mxu0
    %117 = vdwg.mxu0
    %v118 = vtanh.pop %v112
    %v119 = vtanh.pop %v115
    %v120 = vpack.c.bf16 %v119, %v118
    %v122 = vunpack.c.l.b16 %v120
    %v123 = vunpack.c.h.b16 %v120
    %v124 = vpack.c.b16 %v122, %v122
    %v125 = vpack.c.b16 %v123, %v123
    %vm128 = vcmask 257024
    %129 = vst.msk [vmem:[#allocation7] sm:$0xf] %vm128, %v124
    %130 = vst.msk [vmem:[#allocation7 + $0x4] sm:$0xf] %vm128, %v125
    // Predicated region
    $region22: #{tpu_custom_call.1} parent=1 // pred_check
      _
    $region23: #{tpu_custom_call.1} parent=1 // pred_check_branch
      %132 = sbr.rel (0) target = $region25
    $region24: #{tpu_custom_call.1} parent=1 // pred_region
      %s134 = ssub.s32 128, 128
      %135 = vsyncadd [#allocation4], %s134
      %s136 = sshll.u32 [#allocation7], 4
      %s137 = int_to_ptr.vmem [resolvable:$true] %s136
      %142 = dma.vmem_to_hbm [thread:$0]  %s137, 128, %s3, [#allocation4], 64, 64, 4
    $region25: #{tpu_custom_call.1} parent=1 // pred_fallthru
      _
    // Predicated region
    $region26: #{tpu_custom_call.1} parent=1 // pred_check
      _
    $region27: #{tpu_custom_call.1} parent=1 // pred_check_branch
      %144 = sbr.rel (0) target = $region29
    $region28: #{tpu_custom_call.1} parent=1 // pred_region
      %145 = dma.done [#allocation4], 128
    $region29: #{tpu_custom_call.1} parent=1 // pred_fallthru
      _
    %146 = vsyncpa [#allocation3], 1
    %147 = vsyncpa [#allocation6], 1
    %148 = vsyncpa [#allocation4], 1

</llo_original>
